<compile_context>
chip_gen: v5e
topology: v5e:2x2
jax: 0.10.0
libtpu: 0.0.40
codegen_flags: <defaults>
</compile_context>

<pallas_src>
import functools

import jax
import jax.numpy as jnp
from jax import lax
from jax.experimental import pallas as pl
from jax.experimental.pallas import tpu as pltpu


def _round_up(x, m):
    return (x + m - 1) // m * m


# ----------------------------------------------------------------------------
# 1) Row/col tiled GEMM + bias: precomputes all GRU input gates (both directions)
#    bf16 MXU operands, f32 accumulation, bf16 gates output.
# ----------------------------------------------------------------------------
def _gemm_bias_kernel(x_ref, w_ref, b_ref, o_ref):
    acc = jnp.dot(x_ref[...].astype(jnp.bfloat16), w_ref[...],
                  preferred_element_type=jnp.float32)
    o_ref[...] = (acc + b_ref[...]).astype(o_ref.dtype)


def matmul_bias(x, w_bf16, b_f32, *, tm=256, tn=1024, out_dtype=jnp.bfloat16):
    """x: (M, K) @ w: (K, N) [bf16] + b: (N,) [f32] -> (M, N) [out_dtype]."""
    M, K = x.shape
    N = w_bf16.shape[1]
    tm = min(tm, _round_up(M, 8))
    m_pad = _round_up(M, tm)
    if N <= tn:
        tn = N                       # single, full-width (lane-dense) output block
    else:
        tn = _round_up(min(tn, N), 128)
    n_pad = _round_up(N, tn)

    if m_pad != M:
        x = jnp.pad(x, ((0, m_pad - M), (0, 0)))
    w = w_bf16
    b = b_f32
    if n_pad != N:
        w = jnp.pad(w, ((0, 0), (0, n_pad - N)))
        b = jnp.pad(b, (0, n_pad - N))
    b2 = b.reshape(1, n_pad)

    cost = pl.CostEstimate(
        flops=2 * m_pad * K * n_pad,
        transcendentals=0,
        bytes_accessed=(x.size * x.dtype.itemsize + w.size * 2 + b2.size * 4
                        + m_pad * n_pad * jnp.dtype(out_dtype).itemsize))

    out = pl.pallas_call(
        _gemm_bias_kernel,
        out_shape=jax.ShapeDtypeStruct((m_pad, n_pad), out_dtype),
        grid_spec=pltpu.PrefetchScalarGridSpec(
            num_scalar_prefetch=0,
            grid=(m_pad // tm, n_pad // tn),
            in_specs=[
                pl.BlockSpec((tm, K), lambda i, j: (i, 0)),
                pl.BlockSpec((K, tn), lambda i, j: (0, j)),
                pl.BlockSpec((1, tn), lambda i, j: (0, j)),
            ],
            out_specs=pl.BlockSpec((tm, tn), lambda i, j: (i, j)),
        ),
        compiler_params=pltpu.CompilerParams(
            dimension_semantics=("parallel", "parallel"),
            vmem_limit_bytes=64 * 1024 * 1024),
        cost_estimate=cost,
    )(x, w, b2)
    if m_pad != M or n_pad != N:
        out = out[:M, :N]
    return out


# ----------------------------------------------------------------------------
# 2) Bidirectional GRU recurrence, gates streamed from HBM per timestep.
#    Reproduces pack_padded_sequence / pad_packed_sequence: padded steps -> 0.
#    fuse=True: last layer -> (cap_emb, cap_emb_mean) with l2norm/abs/mean fused.
#    fuse=False: intermediate layer -> (T, B, 2H) bf16 activations for next layer.
# ----------------------------------------------------------------------------
def _gru_kernel(gates_hbm, len_ref, whf_ref, whb_ref, bhh_ref, *refs,
                fuse, no_txtnorm, use_abs):
    if fuse:
        cap_ref, mean_ref, bbuf, gf_buf, gb_buf, sem = refs
    else:
        out_ref, gf_buf, gb_buf, sem = refs

    T = gates_hbm.shape[0]
    tb = len_ref.shape[0]
    H = whf_ref.shape[0]
    G3 = 3 * H

    row0 = pl.multiple_of(pl.program_id(0) * tb, tb)

    # Loop-invariant loads hoisted out of the recurrence.
    lengths = len_ref[...]                     # (tb, 1) int32
    # NOTE: kept as a tiny VMEM block (not SMEM) because the t < length mask is a
    # per-row vector compare; it is read once per grid step.
    w_f = whf_ref[...]                         # (H, 3H) bf16
    w_b = whb_ref[...]                         # (H, 3H) bf16
    bhh = bhh_ref[...]                         # (1, 6H) f32
    b_f = bhh[:, 0:G3]
    b_b = bhh[:, G3:2 * G3]

    # Manual double-buffered streaming of the (tb, 3H) gate slices for both
    # directions; keeps VMEM usage independent of T so tb can grow.
    def start_fetch(t_f, t_b, slot):
        pltpu.make_async_copy(
            gates_hbm.at[t_f, pl.ds(row0, tb), pl.ds(0, G3)],
            gf_buf.at[slot], sem.at[0, slot]).start()
        pltpu.make_async_copy(
            gates_hbm.at[t_b, pl.ds(row0, tb), pl.ds(G3, G3)],
            gb_buf.at[slot], sem.at[1, slot]).start()

    def wait_fetch(slot):
        pltpu.make_async_copy(
            gates_hbm.at[0, pl.ds(row0, tb), pl.ds(0, G3)],
            gf_buf.at[slot], sem.at[0, slot]).wait()
        pltpu.make_async_copy(
            gates_hbm.at[0, pl.ds(row0, tb), pl.ds(G3, G3)],
            gb_buf.at[slot], sem.at[1, slot]).wait()

    start_fetch(0, T - 1, 0)

    def cell(h_prev, gx, w_hh_t, b_hh):
        # gx already contains x @ W_ih.T + b_ih ; gate order (r, z, n) as in torch.
        gh = jnp.dot(h_prev.astype(jnp.bfloat16), w_hh_t,
                     preferred_element_type=jnp.float32) + b_hh
        r = jax.nn.sigmoid(gx[:, 0:H] + gh[:, 0:H])
        z = jax.nn.sigmoid(gx[:, H:2 * H] + gh[:, H:2 * H])
        n = jnp.tanh(gx[:, 2 * H:3 * H] + r * gh[:, 2 * H:3 * H])
        return (1.0 - z) * n + z * h_prev

    h0 = jnp.zeros((tb, H), jnp.float32)

    def body(i, carry):
        h_f, h_b = carry
        t_b = T - 1 - i
        slot = i & 1
        wait_fetch(slot)

        @pl.when(i + 1 < T)
        def _():
            start_fetch(i + 1, t_b - 1, 1 - slot)

        gx_f = gf_buf[slot].astype(jnp.float32)     # (tb, 3H)
        gx_b = gb_buf[slot].astype(jnp.float32)

        # Two independent recurrence chains interleaved -> their matmul / EUP /
        # select work overlaps.
        hf_new = cell(h_f, gx_f, w_f, b_f)
        hb_new = cell(h_b, gx_b, w_b, b_b)

        valid_f = i < lengths                       # (tb, 1) bool
        valid_b = t_b < lengths
        h_f = jnp.where(valid_f, hf_new, h_f)
        h_b = jnp.where(valid_b, hb_new, h_b)
        of = jnp.where(valid_f, h_f, 0.0)
        ob = jnp.where(valid_b, h_b, 0.0)

        if fuse:
            cap_ref[i] = of.astype(cap_ref.dtype)   # fwd outputs staged in out block
            bbuf[t_b] = ob
        else:
            out_ref[i, :, 0:H] = of.astype(out_ref.dtype)
            out_ref[t_b, :, H:2 * H] = ob.astype(out_ref.dtype)
        return h_f, h_b

    lax.fori_loop(0, T, body, (h0, h0))

    if fuse:
        eps = 1e-8
        cap = (cap_ref[...] + bbuf[...]) * 0.5      # (T, tb, H) f32
        if not no_txtnorm:
            # x * rsqrt(ss + eps^2) == x / (sqrt(ss) + eps) up to O(eps); exactly 0
            # for all-zero (padded) rows, matching the reference. rsqrt -> EUP.
            ss = jnp.sum(cap * cap, axis=-1, keepdims=True)
            cap = cap * lax.rsqrt(ss + eps * eps)
        if use_abs:
            cap = jnp.abs(cap)
        cap_ref[...] = cap.astype(cap_ref.dtype)
        # torch.mean over dim=1 divides by T including zero-padded timesteps.
        mean = jnp.sum(cap, axis=0) * (1.0 / T)
        if not no_txtnorm:
            ssm = jnp.sum(mean * mean, axis=-1, keepdims=True)
            mean = mean * lax.rsqrt(ssm + eps * eps)
        mean_ref[...] = mean.astype(mean_ref.dtype)


def gru_bidir(gates_tm, lengths_col, w_hh_f_t, w_hh_b_t, b_hh_cat, *, tb,
              fuse, no_txtnorm=False, use_abs=False, out_dtype=jnp.bfloat16):
    """gates_tm: (T, B_pad, 6H) time-major precomputed input gates (bf16).
       fuse=True  -> (cap (T,B_pad,H) f32, mean (B_pad,H) f32)
       fuse=False -> (T, B_pad, 2H) out_dtype  (fwd | bwd)"""
    T, B_pad, G6 = gates_tm.shape
    H = G6 // 6
    kernel = functools.partial(_gru_kernel, fuse=fuse,
                               no_txtnorm=no_txtnorm, use_abs=use_abs)

    gate_bufs = [pltpu.VMEM((2, tb, 3 * H), gates_tm.dtype),   # fwd gate stream
                 pltpu.VMEM((2, tb, 3 * H), gates_tm.dtype),   # bwd gate stream
                 pltpu.SemaphoreType.DMA((2, 2))]
    if fuse:
        out_shape = (jax.ShapeDtypeStruct((T, B_pad, H), jnp.float32),
                     jax.ShapeDtypeStruct((B_pad, H), jnp.float32))
        out_specs = (pl.BlockSpec((T, tb, H), lambda i: (0, i, 0)),
                     pl.BlockSpec((tb, H), lambda i: (i, 0)))
        scratch = [pltpu.VMEM((T, tb, H), jnp.float32)] + gate_bufs  # bwd outputs
    else:
        out_shape = jax.ShapeDtypeStruct((T, B_pad, 2 * H), out_dtype)
        out_specs = pl.BlockSpec((T, tb, 2 * H), lambda i: (0, i, 0))
        scratch = gate_bufs

    return pl.pallas_call(
        kernel,
        out_shape=out_shape,
        grid_spec=pltpu.PrefetchScalarGridSpec(
            num_scalar_prefetch=0,
            grid=(B_pad // tb,),
            in_specs=[
                pl.BlockSpec(memory_space=pl.ANY),              # gates stay in HBM
                pl.BlockSpec((tb, 1), lambda i: (i, 0)),
                pl.BlockSpec((H, 3 * H), lambda i: (0, 0)),
                pl.BlockSpec((H, 3 * H), lambda i: (0, 0)),
                pl.BlockSpec((1, 6 * H), lambda i: (0, 0)),
            ],
            out_specs=out_specs,
            scratch_shapes=scratch),
        compiler_params=pltpu.CompilerParams(
            dimension_semantics=("parallel",),
            vmem_limit_bytes=64 * 1024 * 1024),
    )(gates_tm, lengths_col, w_hh_f_t, w_hh_b_t, b_hh_cat)


# ----------------------------------------------------------------------------
# Top-level EncoderText.forward
# ----------------------------------------------------------------------------
def encoder_text_forward(tokens, lengths, params, *, no_txtnorm=False,
                         use_abs=False, tb=32, tm=256, tn=1024):
    """tokens: (B, T) int32, lengths: (B,) int32 (assumes max(lengths) == T, as
       produced by pack_padded_sequence on the max-length batch element).
       Returns (cap_emb (B, T, H), cap_emb_mean (B, H))."""
    B, T = tokens.shape
    H = params['layers'][0]['w_hh_f'].shape[1]          # w_hh: (3H, H)

    tb = max(8, min(tb, _round_up(B, 8)))
    B_pad = _round_up(B, tb)
    tokens_p = jnp.pad(tokens, ((0, B_pad - B), (0, 0)))
    lengths_p = jnp.pad(lengths.astype(jnp.int32), (0, B_pad - B))
    lengths_col = lengths_p.reshape(B_pad, 1)

    # 1) embedding lookup, time-major (keeps everything (T, B, ...)). XLA's gather
    #    is bandwidth-optimal here; a per-row Pallas gather was pure grid overhead.
    ids_tm = jnp.transpose(tokens_p).reshape(T * B_pad)
    x = jnp.take(params['embedding'], ids_tm, axis=0)    # (T*B_pad, word_dim) f32
    # TODO(synk): nn.Dropout is identity in eval mode; training-mode dropout would
    # use pltpu.prng_seed/prng_random_bits fused into the gates GEMM kernel.

    # 2) stacked bidirectional GRU layers (packed-sequence semantics via masking)
    n_layers = len(params['layers'])
    cap_tm = mean = None
    for li, lp in enumerate(params['layers']):
        last = (li == n_layers - 1)
        w_cat = jnp.concatenate([lp['w_ih_f'].T, lp['w_ih_b'].T],
                                axis=1).astype(jnp.bfloat16)           # (Din, 6H)
        b_cat = jnp.concatenate([lp['b_ih_f'], lp['b_ih_b']],
                                axis=0).astype(jnp.float32)            # (6H,)
        gates = matmul_bias(x, w_cat, b_cat, tm=tm, tn=tn)             # (T*B_pad, 6H) bf16
        gates_tm = gates.reshape(T, B_pad, 6 * H)

        whf_t = lp['w_hh_f'].T.astype(jnp.bfloat16)                    # (H, 3H)
        whb_t = lp['w_hh_b'].T.astype(jnp.bfloat16)
        bhh = jnp.concatenate([lp['b_hh_f'], lp['b_hh_b']],
                              axis=0).reshape(1, 6 * H).astype(jnp.float32)

        if last:
            # combine (fwd+bwd)/2 + l2norm + abs + time-mean fused into the epilogue
            cap_tm, mean = gru_bidir(gates_tm, lengths_col, whf_t, whb_t, bhh,
                                     tb=tb, fuse=True,
                                     no_txtnorm=no_txtnorm, use_abs=use_abs)
        else:
            out = gru_bidir(gates_tm, lengths_col, whf_t, whb_t, bhh,
                            tb=tb, fuse=False)                         # (T,B_pad,2H) bf16
            x = out.reshape(T * B_pad, 2 * H)

    cap_emb = jnp.transpose(cap_tm, (1, 0, 2))[:B]       # (B, T, H)
    cap_emb_mean = mean[:B]
    return cap_emb, cap_emb_mean


# ----------------------------------------------------------------------------
# Pure-JAX f32 reference (same semantics) for correctness checking
# ----------------------------------------------------------------------------
def _l2norm(x, eps=1e-8):
    return x / (jnp.sqrt(jnp.sum(x * x, axis=-1, keepdims=True)) + eps)


def encoder_text_reference(tokens, lengths, params, *, no_txtnorm=False, use_abs=False):
    B, T = tokens.shape
    x = params['embedding'][tokens]                      # (B, T, word_dim)
    fwd = bwd = None
    for lp in params['layers']:
        H = lp['w_hh_f'].shape[1]

        def run_dir(w_ih, w_hh, b_ih, b_hh, reverse):
            h = jnp.zeros((B, H), jnp.float32)
            outs = [None] * T
            order = range(T - 1, -1, -1) if reverse else range(T)
            for t in order:
                gi = x[:, t] @ w_ih.T + b_ih
                gh = h @ w_hh.T + b_hh
                r = jax.nn.sigmoid(gi[:, :H] + gh[:, :H])
                z = jax.nn.sigmoid(gi[:, H:2 * H] + gh[:, H:2 * H])
                n = jnp.tanh(gi[:, 2 * H:] + r * gh[:, 2 * H:])
                h_new = (1.0 - z) * n + z * h
                valid = (t < lengths)[:, None]
                h = jnp.where(valid, h_new, h)
                outs[t] = jnp.where(valid, h, 0.0)
            return jnp.stack(outs, axis=1)               # (B, T, H)

        fwd = run_dir(lp['w_ih_f'], lp['w_hh_f'], lp['b_ih_f'], lp['b_hh_f'], False)
        bwd = run_dir(lp['w_ih_b'], lp['w_hh_b'], lp['b_ih_b'], lp['b_hh_b'], True)
        x = jnp.concatenate([fwd, bwd], axis=-1)
    cap = (fwd + bwd) * 0.5
    if not no_txtnorm:
        cap = _l2norm(cap)
    if use_abs:
        cap = jnp.abs(cap)
    mean = jnp.mean(cap, axis=1)
    if not no_txtnorm:
        mean = _l2norm(mean)
    return cap, mean


if __name__ == "__main__":
    vocab_size, word_dim, embed_size = 64, 32, 32
    B, T, num_layers = 4, 8, 1

    key = jax.random.PRNGKey(0)
    keys = jax.random.split(key, 2 + 8 * num_layers)
    tokens = jax.random.randint(keys[0], (B, T), 0, vocab_size, dtype=jnp.int32)
    lengths = jnp.array([8, 7, 5, 3], dtype=jnp.int32)   # sorted desc, max == T

    params = {
        'embedding': jax.random.normal(keys[1], (vocab_size, word_dim), jnp.float32) * 0.1,
        'layers': [],
    }
    din = word_dim
    for l in range(num_layers):
        kk = keys[2 + 8 * l: 2 + 8 * (l + 1)]
        params['layers'].append({
            'w_ih_f': jax.random.normal(kk[0], (3 * embed_size, din), jnp.float32) * 0.1,
            'w_hh_f': jax.random.normal(kk[1], (3 * embed_size, embed_size), jnp.float32) * 0.1,
            'b_ih_f': jax.random.normal(kk[2], (3 * embed_size,), jnp.float32) * 0.01,
            'b_hh_f': jax.random.normal(kk[3], (3 * embed_size,), jnp.float32) * 0.01,
            'w_ih_b': jax.random.normal(kk[4], (3 * embed_size, din), jnp.float32) * 0.1,
            'w_hh_b': jax.random.normal(kk[5], (3 * embed_size, embed_size), jnp.float32) * 0.1,
            'b_ih_b': jax.random.normal(kk[6], (3 * embed_size,), jnp.float32) * 0.01,
            'b_hh_b': jax.random.normal(kk[7], (3 * embed_size,), jnp.float32) * 0.01,
        })
        din = 2 * embed_size

    cap_emb, cap_mean = encoder_text_forward(tokens, lengths, params,
                                             no_txtnorm=False, use_abs=False)
    jax.block_until_ready((cap_emb, cap_mean))

    cap_ref, mean_ref = encoder_text_reference(tokens, lengths, params,
                                               no_txtnorm=False, use_abs=False)
    assert cap_emb.shape == (B, T, embed_size)
    assert cap_mean.shape == (B, embed_size)
    # bf16 MXU operands / bf16 gate storage vs. a pure-f32 reference -> ~1e-3..1e-2
    # element error on O(0.2) l2-normalized values; 2e-2 bounds that comfortably.
    assert jnp.allclose(cap_emb, cap_ref, atol=2e-2, rtol=2e-2)
    assert jnp.allclose(cap_mean, mean_ref, atol=2e-2, rtol=2e-2)

    print("KERNEL_OK")
</pallas_src>

<mosaic_0001>
module attributes {stable_mosaic.version = 11 : i64} {
  func.func @_gemm_bias_kernel(%arg0: i32, %arg1: i32, %arg2: memref<64x32xf32, #tpu.memory_space<vmem>>, %arg3: memref<32x192xbf16, #tpu.memory_space<vmem>>, %arg4: memref<1x192xf32, #tpu.memory_space<vmem>>, %arg5: memref<64x192xbf16, #tpu.memory_space<vmem>>) attributes {dimension_semantics = [#tpu.dimension_semantics<parallel>, #tpu.dimension_semantics<parallel>], iteration_bounds = array<i64: 1, 1>, scalar_prefetch = 0 : i64, scratch_operands = 0 : i64, tpu.core_type = #tpu.core_type<tc>, window_params = [{transform_indices = @transform_0, window_bounds = array<i64: 64, 32>}, {transform_indices = @transform_1, window_bounds = array<i64: 32, 192>}, {transform_indices = @transform_2, window_bounds = array<i64: 1, 192>}, {transform_indices = @transform_3, window_bounds = array<i64: 64, 192>}]} {
    %c0 = arith.constant 0 : index
    %c0_0 = arith.constant 0 : index
    %0 = vector.load %arg2[%c0, %c0_0] : memref<64x32xf32, #tpu.memory_space<vmem>>, vector<64x32xf32>
    %1 = arith.truncf %0 : vector<64x32xf32> to vector<64x32xbf16>
    %c0_1 = arith.constant 0 : index
    %c0_2 = arith.constant 0 : index
    %2 = vector.load %arg3[%c0_1, %c0_2] : memref<32x192xbf16, #tpu.memory_space<vmem>>, vector<32x192xbf16>
    %cst = arith.constant dense<0.000000e+00> : vector<64x192xf32>
    %3 = tpu.matmul %1, %2, %cst {dimension_numbers = #tpu.dot_dimension_numbers<[1], [0], [0], [1], [0, 0, 1, 1], [], []>} : vector<64x32xbf16>, vector<32x192xbf16>, vector<64x192xf32> -> vector<64x192xf32>
    %c0_3 = arith.constant 0 : index
    %c0_4 = arith.constant 0 : index
    %4 = vector.load %arg4[%c0_3, %c0_4] : memref<1x192xf32, #tpu.memory_space<vmem>>, vector<1x192xf32>
    %5 = vector.broadcast %4 : vector<1x192xf32> to vector<64x192xf32>
    %6 = arith.addf %3, %5 : vector<64x192xf32>
    %7 = arith.truncf %6 : vector<64x192xf32> to vector<64x192xbf16>
    %c0_5 = arith.constant 0 : index
    %c0_6 = arith.constant 0 : index
    %8 = vector.load %arg5[%c0_5, %c0_6] : memref<64x192xbf16, #tpu.memory_space<vmem>>, vector<64x192xbf16>
    tpu.vector_store %arg5[%c0_5, %c0_6], %7 {strides = array<i32>} : memref<64x192xbf16, #tpu.memory_space<vmem>>, vector<64x192xbf16>,
    return
  }
  func.func @transform_0(%arg0: i32, %arg1: i32) -> (i32, i32) {
    %c0_i32 = arith.constant 0 : i32
    %c0_i32_0 = arith.constant 0 : i32
    return %arg0, %c0_i32 : i32, i32
  }
  func.func @transform_1(%arg0: i32, %arg1: i32) -> (i32, i32) {
    %c0_i32 = arith.constant 0 : i32
    %c0_i32_0 = arith.constant 0 : i32
    return %c0_i32, %arg1 : i32, i32
  }
  func.func @transform_2(%arg0: i32, %arg1: i32) -> (i32, i32) {
    %c0_i32 = arith.constant 0 : i32
    %c0_i32_0 = arith.constant 0 : i32
    return %c0_i32, %arg1 : i32, i32
  }
  func.func @transform_3(%arg0: i32, %arg1: i32) -> (i32, i32) {
    %c0_i32 = arith.constant 0 : i32
    return %arg0, %arg1 : i32, i32
  }
}

</mosaic_0001>

<llo_original>
// kernel: tpu_custom_call.1
$region0: #{tpu_custom_call.1}
  #allocation0 [shape = 'u32[]', space=smem, size = 0x4, offset = 0x4, fixed_abs, tag = 'smem constant byte address 0x4 - core index']
  #allocation1 [shape = 'u32[72,128]{1,0:T(1,128)}', space=vmem, size = 0x9000, scoped, tag = 'internal scratch']
  %s0 = inlined_call_operand.vmem [shape: f32[64,32], index: 0, kind: input, shape index: {}]
  %s1 = inlined_call_operand.vmem [shape: bf16[32,192], index: 1, kind: input, shape index: {}]
  %s2 = inlined_call_operand.vmem [shape: f32[1,192], index: 2, kind: input, shape index: {}]
  %s3 = inlined_call_operand.hbm [shape: bf16[64,192], index: 3, kind: output, shape index: {}]
  %s4 = sld [smem:[#allocation0]]
  $region22: #{tpu_custom_call.1} parent=0
    _
  %s6 = ssub.s32 1, %s4
  %s7 = scalar_select 0, %s6, %s4
  $region1: #{tpu_custom_call.1} parent=0
    #allocation2 [shape = 'u8[32768]{0}', space=vmem, size = 0x8000, scoped, tag = 'output window, operand 0, single buffered']
    #allocation3 [shape = 's32[1]{0}', space=sflag, size = 0x4, scoped, tag = 'scoped memory for tpu_custom_call.1']
    %8 = vsyncpa [#allocation3], 0
    // Predicated region
    $region2: #{tpu_custom_call.1} parent=1 // pred_check
      _
    $region3: #{tpu_custom_call.1} parent=1 // pred_check_branch
      %10 = sbr.rel (0) target = $region5
    $region4: #{tpu_custom_call.1} parent=1 // pred_region
      _
    $region5: #{tpu_custom_call.1} parent=1 // pred_fallthru
      _
    // Predicated region
    $region6: #{tpu_custom_call.1} parent=1 // pred_check
      _
    $region7: #{tpu_custom_call.1} parent=1 // pred_check_branch
      %12 = sbr.rel (0) target = $region9
    $region8: #{tpu_custom_call.1} parent=1 // pred_region
      _
    $region9: #{tpu_custom_call.1} parent=1 // pred_fallthru
      _
    // Predicated region
    $region10: #{tpu_custom_call.1} parent=1 // pred_check
      _
    $region11: #{tpu_custom_call.1} parent=1 // pred_check_branch
      %14 = sbr.rel (0) target = $region13
    $region12: #{tpu_custom_call.1} parent=1 // pred_region
      _
    $region13: #{tpu_custom_call.1} parent=1 // pred_fallthru
      _
    %v16 = vld [vmem:[%s0] sm:$0xff]
    %v17 = vld [vmem:[%s0 + $0x8] sm:$0xff]
    %v18 = vld [vmem:[%s0 + $0x10] sm:$0xff]
    %v19 = vld [vmem:[%s0 + $0x18] sm:$0xff]
    %v20 = vld [vmem:[%s0 + $0x20] sm:$0xff]
    %v21 = vld [vmem:[%s0 + $0x28] sm:$0xff]
    %v22 = vld [vmem:[%s0 + $0x30] sm:$0xff]
    %v23 = vld [vmem:[%s0 + $0x38] sm:$0xff]
    %v24 = vpack.c.bf16 %v17, %v16
    %v25 = vpack.c.bf16 %v19, %v18
    %v26 = vpack.c.bf16 %v21, %v20
    %v27 = vpack.c.bf16 %v23, %v22
    %v28 = vld [vmem:[%s1] sm:$0xff]
    %v29 = vld [vmem:[%s1 + $0x8] sm:$0xff]
    %v30 = vld [vmem:[%s1 + $0x10] sm:$0xff]
    %v31 = vld [vmem:[%s1 + $0x18] sm:$0xff]
    %v32 = vld [vmem:[%s2] sm:$0x3]
    %v34 = vperm.slane %v32, 0
    %v35 = vperm.slane %v32, 1
    %v42 = vunpack.c.l.b16 %v28
    %v43 = vunpack.c.h.b16 %v28
    %v44 = vunpack.c.l.b16 %v29
    %v45 = vunpack.c.h.b16 %v29
    %v46 = vunpack.c.l.b16 %v30
    %v47 = vunpack.c.h.b16 %v30
    %v48 = vunpack.c.l.b16 %v31
    %v49 = vunpack.c.h.b16 %v31
    %v50 = vpack.c.b16 %v44, %v42
    %v51 = vpack.c.b16 %v45, %v43
    %v52 = vpack.c.b16 %v48, %v46
    %v53 = vpack.c.b16 %v49, %v47
    %vm58 = vcmask 261120
    %v60 = vsel %vm58, %v24, 0
    %v63 = vsel %vm58, %v25, 0
    %v66 = vsel %vm58, %v26, 0
    %v69 = vsel %vm58, %v27, 0
    %71 = vmatpush.bf16.msra.mxu0 0
    %72 = vmatpush.bf16.msra.mxu0 0
    %73 = vmatpush.bf16.msra.mxu0 0
    %74 = vmatpush.bf16.msra.mxu0 0
    %75 = vmatpush.bf16.msra.mxu0 0
    %76 = vmatpush.bf16.msra.mxu0 0
    %77 = vmatpush.bf16.msra.mxu0 %v52
    %78 = vmatpush.bf16.msra.mxu0 %v50
    %79 = vmatmul.bf16.gmra.mxu0 %v60
    %v80 = vpop.f32.mrf.mxu0
    %v81 = vadd.f32 %v34, %v80
    %v82 = vpop.f32.mrf.mxu0
    %v83 = vadd.f32 %v34, %v82
    %84 = vmatmul.bf16.gmra.mxu0 %v63
    %v85 = vpop.f32.mrf.mxu0
    %v86 = vadd.f32 %v34, %v85
    %v87 = vpop.f32.mrf.mxu0
    %v88 = vadd.f32 %v34, %v87
    %89 = vmatmul.bf16.gmra.mxu0 %v66
    %v90 = vpop.f32.mrf.mxu0
    %v91 = vadd.f32 %v34, %v90
    %v92 = vpop.f32.mrf.mxu0
    %v93 = vadd.f32 %v34, %v92
    %94 = vmatmul.bf16.gmra.mxu0 %v69
    %v95 = vpop.f32.mrf.mxu0
    %v96 = vadd.f32 %v34, %v95
    %v97 = vpop.f32.mrf.mxu0
    %v98 = vadd.f32 %v34, %v97
    %99 = vdwg.mxu0
    %100 = vmatpush.bf16.msra.mxu0 0
    %101 = vmatpush.bf16.msra.mxu0 0
    %102 = vmatpush.bf16.msra.mxu0 0
    %103 = vmatpush.bf16.msra.mxu0 0
    %104 = vmatpush.bf16.msra.mxu0 0
    %105 = vmatpush.bf16.msra.mxu0 0
    %106 = vmatpush.bf16.msra.mxu0 %v53
    %107 = vmatpush.bf16.msra.mxu0 %v51
    %108 = vmatmul.bf16.gmra.mxu0 %v60
    %v109 = vpop.f32.mrf.mxu0
    %v110 = vadd.f32 %v35, %v109
    %v111 = vpop.f32.mrf.mxu0
    %v112 = vadd.f32 %v35, %v111
    %113 = vmatmul.bf16.gmra.mxu0 %v63
    %v114 = vpop.f32.mrf.mxu0
    %v115 = vadd.f32 %v35, %v114
    %v116 = vpop.f32.mrf.mxu0
    %v117 = vadd.f32 %v35, %v116
    %118 = vmatmul.bf16.gmra.mxu0 %v66
    %v119 = vpop.f32.mrf.mxu0
    %v120 = vadd.f32 %v35, %v119
    %v121 = vpop.f32.mrf.mxu0
    %v122 = vadd.f32 %v35, %v121
    %123 = vmatmul.bf16.gmra.mxu0 %v69
    %v124 = vpop.f32.mrf.mxu0
    %v125 = vadd.f32 %v35, %v124
    %v126 = vpop.f32.mrf.mxu0
    %v127 = vadd.f32 %v35, %v126
    %128 = vdwg.mxu0
    %v129 = vpack.c.bf16 %v110, %v81
    %v130 = vpack.c.bf16 %v112, %v83
    %v131 = vpack.c.bf16 %v115, %v86
    %v132 = vpack.c.bf16 %v117, %v88
    %v133 = vpack.c.bf16 %v120, %v91
    %v134 = vpack.c.bf16 %v122, %v93
    %v135 = vpack.c.bf16 %v125, %v96
    %v136 = vpack.c.bf16 %v127, %v98
    %vm137 = vcmask 1043456
    %vm138 = vcmask 523268
    %vm139 = vmor %vm138, %vm137
    %140 = vst.msk [vmem:[#allocation2] sm:$0xff] %vm139, %v129
    %141 = vst.msk [vmem:[#allocation2 + $0x8] sm:$0xff] %vm139, %v130
    %142 = vst.msk [vmem:[#allocation2 + $0x10] sm:$0xff] %vm139, %v131
    %143 = vst.msk [vmem:[#allocation2 + $0x18] sm:$0xff] %vm139, %v132
    %144 = vst.msk [vmem:[#allocation2 + $0x20] sm:$0xff] %vm139, %v133
    %145 = vst.msk [vmem:[#allocation2 + $0x28] sm:$0xff] %vm139, %v134
    %146 = vst.msk [vmem:[#allocation2 + $0x30] sm:$0xff] %vm139, %v135
    %147 = vst.msk [vmem:[#allocation2 + $0x38] sm:$0xff] %vm139, %v136
    // Predicated region
    $region14: #{tpu_custom_call.1} parent=1 // pred_check
      _
    $region15: #{tpu_custom_call.1} parent=1 // pred_check_branch
      %149 = sbr.rel (0) target = $region17
    $region16: #{tpu_custom_call.1} parent=1 // pred_region
      %151 = vsyncadd [#allocation3], 0
      %s152 = sshll.u32 [#allocation2], 4
      %s153 = int_to_ptr.vmem [resolvable:$true] %s152
      %s154 = sshll.u32 %s3, 4
      %s155 = int_to_ptr.hbm [resolvable:$true] %s154
      %160 = dma.vmem_to_hbm [thread:$0]  %s153, 1024, %s155, [#allocation3], 128, 128, 8
    $region17: #{tpu_custom_call.1} parent=1 // pred_fallthru
      _
    // Predicated region
    $region18: #{tpu_custom_call.1} parent=1 // pred_check
      _
    $region19: #{tpu_custom_call.1} parent=1 // pred_check_branch
      %162 = sbr.rel (0) target = $region21
    $region20: #{tpu_custom_call.1} parent=1 // pred_region
      %164 = dma.done [#allocation3], 1024
    $region21: #{tpu_custom_call.1} parent=1 // pred_fallthru
      _
    %165 = vsyncpa [#allocation3], 1

</llo_original>
